<compile_context>
chip_gen: v7x
topology: tpu7x:2x2x1
jax: 0.10.0
libtpu: 0.0.40
codegen_flags: <defaults>
</compile_context>

<pallas_src>
import functools

import jax
import jax.numpy as jnp
from jax.experimental import pallas as pl
from jax.experimental.pallas import tpu as pltpu

INPUT_SIZE = 5
HIDDEN_SIZE = 3
NUM_CLASSES = 3

IN_PAD = 8          # feature (sublane) padding; row INPUT_SIZE is the constant-1 bias row
HID_PAD = 8         # hidden (sublane) padding; row HIDDEN_SIZE carries the constant 1
OUT_PAD = 8         # output (sublane) padding
LANE = 128          # batch lives on the lane axis, padded to a multiple of 128
MAX_BLOCK_B = 32768 # batch lanes per grid step (review: 32K-64K; ~3 MiB double-buffered)


def _round_up(n, m):
    return ((n + m - 1) // m) * m


def _choose_blocks(batch):
    """Pick (blk, nblk): nblk roughly-equal 128-multiple blocks covering the batch."""
    b128 = _round_up(max(batch, 1), LANE)
    nblk = pl.cdiv(b128, MAX_BLOCK_B)
    # v7x has 2 TensorCores; keep >=2 parallel blocks whenever there is enough work
    # so the "parallel" grid axis shards across both.  Neutral on v5e/v6e.
    if b128 >= 2 * LANE:
        nblk = max(nblk, 2)
    blk = _round_up(pl.cdiv(b128, nblk), LANE)
    return blk, nblk


def _mlp_kernel(x_ref, w1_ref, w2_ref, o_ref):
    # x block: (IN_PAD, blk) f32, batch on lanes, row INPUT_SIZE == 1.0 (bias lane).
    x = x_ref[...]
    # hidden = relu(W1_aug @ x): b1 is folded into column INPUT_SIZE of W1_aug, and
    # row HIDDEN_SIZE of W1_aug produces a constant 1 (relu(1)=1) for the b2 fold.
    h = jnp.maximum(
        jnp.dot(w1_ref[...], x, preferred_element_type=jnp.float32), 0.0)
    # logits = W2_aug @ h: b2 is folded into column HIDDEN_SIZE of W2_aug.
    o = jnp.dot(w2_ref[...], h, preferred_element_type=jnp.float32)
    o_ref[...] = o.astype(o_ref.dtype)   # bf16 writeback (lane-dense vst)


def prepare_params(w1, b1, w2, b2):
    """Pad / cast / transpose the weights ONCE, folding both biases in.

    Inputs follow the x @ W convention:
      w1 (INPUT_SIZE, HIDDEN_SIZE), b1 (HIDDEN_SIZE,),
      w2 (HIDDEN_SIZE, NUM_CLASSES), b2 (NUM_CLASSES,)
    Returns VMEM-resident operands: w1_aug (HID_PAD, IN_PAD) f32,
                                    w2_aug (OUT_PAD, HID_PAD) f32.
    """
    w1_aug = jnp.zeros((HID_PAD, IN_PAD), jnp.float32)
    w1_aug = w1_aug.at[:HIDDEN_SIZE, :INPUT_SIZE].set(w1.astype(jnp.float32).T)
    w1_aug = w1_aug.at[:HIDDEN_SIZE, INPUT_SIZE].set(b1.astype(jnp.float32))  # b1 fold
    w1_aug = w1_aug.at[HIDDEN_SIZE, INPUT_SIZE].set(1.0)   # propagate constant 1 to hidden

    w2_aug = jnp.zeros((OUT_PAD, HID_PAD), jnp.float32)
    w2_aug = w2_aug.at[:NUM_CLASSES, :HIDDEN_SIZE].set(w2.astype(jnp.float32).T)
    w2_aug = w2_aug.at[:NUM_CLASSES, HIDDEN_SIZE].set(b2.astype(jnp.float32))  # b2 fold
    return w1_aug, w2_aug


def pack_inputs(x, b_pad):
    """(batch, INPUT_SIZE) f32 -> (IN_PAD, b_pad) f32, batch on lanes, bias row = 1."""
    batch = x.shape[0]
    x_t = jnp.zeros((IN_PAD, b_pad), jnp.float32)
    x_t = x_t.at[:INPUT_SIZE, :batch].set(x.astype(jnp.float32).T)
    x_t = x_t.at[INPUT_SIZE, :batch].set(1.0)          # bias lane (0 on padded lanes)
    return x_t


def simple_nn_forward_packed(x_packed, params, *, blk):
    """Performance entry point: x already in (IN_PAD, b_pad) layout, logits returned
    in (OUT_PAD, b_pad) bf16 layout (rows [:NUM_CLASSES] are valid).  No wrapper-side
    layout passes."""
    w1_aug, w2_aug = params
    b_pad = x_packed.shape[1]
    grid = (b_pad // blk,)
    return pl.pallas_call(
        _mlp_kernel,
        out_shape=jax.ShapeDtypeStruct((OUT_PAD, b_pad), jnp.bfloat16),
        grid=grid,
        in_specs=[
            pl.BlockSpec((IN_PAD, blk), lambda i: (0, i)),       # x: streamed over batch
            pl.BlockSpec((HID_PAD, IN_PAD), lambda i: (0, 0)),   # W1_aug: resident
            pl.BlockSpec((OUT_PAD, HID_PAD), lambda i: (0, 0)),  # W2_aug: resident
        ],
        out_specs=pl.BlockSpec((OUT_PAD, blk), lambda i: (0, i)),
        compiler_params=pltpu.CompilerParams(
            dimension_semantics=("parallel",),
            vmem_limit_bytes=32 * 1024 * 1024,
        ),
    )(x_packed, w1_aug, w2_aug)


@jax.jit
def simple_nn_forward(x, params):
    """Drop-in module parity: x (batch, INPUT_SIZE) f32 -> logits (batch, NUM_CLASSES) f32.
    Pack / kernel / unpack are fused in one jit so the layout plumbing is a single
    XLA program; prefer simple_nn_forward_packed when the caller controls layout."""
    batch = x.shape[0]
    blk, nblk = _choose_blocks(batch)
    x_packed = pack_inputs(x, blk * nblk)
    out_t = simple_nn_forward_packed(x_packed, params, blk=blk)
    return out_t[:NUM_CLASSES, :batch].T.astype(jnp.float32)


def init_params(key):
    """Deterministic init mirroring nn.Linear's U(-1/sqrt(fan_in), 1/sqrt(fan_in))."""
    k1, k2, k3, k4 = jax.random.split(key, 4)
    bound1 = 1.0 / jnp.sqrt(float(INPUT_SIZE))
    bound2 = 1.0 / jnp.sqrt(float(HIDDEN_SIZE))
    w1 = jax.random.uniform(k1, (INPUT_SIZE, HIDDEN_SIZE), jnp.float32, -bound1, bound1)
    b1 = jax.random.uniform(k2, (HIDDEN_SIZE,), jnp.float32, -bound1, bound1)
    w2 = jax.random.uniform(k3, (HIDDEN_SIZE, NUM_CLASSES), jnp.float32, -bound2, bound2)
    b2 = jax.random.uniform(k4, (NUM_CLASSES,), jnp.float32, -bound2, bound2)
    return w1, b1, w2, b2


def _reference(x, w1, b1, w2, b2):
    return jnp.maximum(x @ w1 + b1, 0.0) @ w2 + b2


if __name__ == "__main__":
    key = jax.random.PRNGKey(0)
    w1, b1, w2, b2 = init_params(key)
    params = prepare_params(w1, b1, w2, b2)   # padded / bias-folded once, reused

    # Batch of 2: the module's example input plus one random row.
    x_example = jnp.array([[0.5, 1.0, -0.5, 2.0, -1.0]], dtype=jnp.float32)
    x_rand = jax.random.normal(jax.random.PRNGKey(1), (1, INPUT_SIZE), jnp.float32)
    x_small = jnp.concatenate([x_example, x_rand], axis=0)   # (2, 5)

    logits = jax.block_until_ready(simple_nn_forward(x_small, params))
    assert logits.shape == (2, NUM_CLASSES)
    # f32 compute end-to-end; only the final bf16 logit store rounds (~0.4% rel).
    assert jnp.allclose(logits, _reference(x_small, w1, b1, w2, b2),
                        atol=2e-2, rtol=2e-2), "mismatch vs reference (small batch)"

    # Larger batch exercising the multi-block grid (nblk=2 parallel blocks, blk=384).
    x_big = jax.random.normal(jax.random.PRNGKey(2), (640, INPUT_SIZE), jnp.float32)
    logits_big = jax.block_until_ready(simple_nn_forward(x_big, params))
    assert logits_big.shape == (640, NUM_CLASSES)
    assert jnp.allclose(logits_big, _reference(x_big, w1, b1, w2, b2),
                        atol=2e-2, rtol=2e-2), "mismatch vs reference (big batch)"

    print("KERNEL_OK")
</pallas_src>

<mosaic_0001>
module attributes {stable_mosaic.version = 11 : i64} {
  func.func @_mlp_kernel(%arg0: i32, %arg1: memref<8x128xf32, #tpu.memory_space<vmem>>, %arg2: memref<8x8xf32, #tpu.memory_space<vmem>>, %arg3: memref<8x8xf32, #tpu.memory_space<vmem>>, %arg4: memref<8x128xbf16, #tpu.memory_space<vmem>>) attributes {dimension_semantics = [#tpu.dimension_semantics<parallel>], iteration_bounds = array<i64: 1>, scalar_prefetch = 0 : i64, scratch_operands = 0 : i64, tpu.core_type = #tpu.core_type<tc>, window_params = [{transform_indices = @transform_0, window_bounds = array<i64: 8, 128>}, {pipeline_mode = #tpu.pipeline_mode<synchronous>, transform_indices = @transform_1, window_bounds = array<i64: 8, 8>}, {pipeline_mode = #tpu.pipeline_mode<synchronous>, transform_indices = @transform_2, window_bounds = array<i64: 8, 8>}, {transform_indices = @transform_3, window_bounds = array<i64: 8, 128>}]} {
    %c0 = arith.constant 0 : index
    %c0_0 = arith.constant 0 : index
    %0 = vector.load %arg1[%c0, %c0_0] : memref<8x128xf32, #tpu.memory_space<vmem>>, vector<8x128xf32>
    %c0_1 = arith.constant 0 : index
    %c0_2 = arith.constant 0 : index
    %1 = vector.load %arg2[%c0_1, %c0_2] : memref<8x8xf32, #tpu.memory_space<vmem>>, vector<8x8xf32>
    %cst = arith.constant dense<0.000000e+00> : vector<8x128xf32>
    %2 = tpu.matmul %1, %0, %cst {dimension_numbers = #tpu.dot_dimension_numbers<[1], [0], [0], [1], [0, 0, 1, 1], [], []>} : vector<8x8xf32>, vector<8x128xf32>, vector<8x128xf32> -> vector<8x128xf32>
    %cst_3 = arith.constant 0.000000e+00 : f32
    %3 = vector.broadcast %cst_3 : f32 to vector<8x128xf32>
    %4 = arith.maximumf %2, %3 : vector<8x128xf32>
    %c0_4 = arith.constant 0 : index
    %c0_5 = arith.constant 0 : index
    %5 = vector.load %arg3[%c0_4, %c0_5] : memref<8x8xf32, #tpu.memory_space<vmem>>, vector<8x8xf32>
    %cst_6 = arith.constant dense<0.000000e+00> : vector<8x128xf32>
    %6 = tpu.matmul %5, %4, %cst_6 {dimension_numbers = #tpu.dot_dimension_numbers<[1], [0], [0], [1], [0, 0, 1, 1], [], []>} : vector<8x8xf32>, vector<8x128xf32>, vector<8x128xf32> -> vector<8x128xf32>
    %7 = arith.truncf %6 : vector<8x128xf32> to vector<8x128xbf16>
    %c0_7 = arith.constant 0 : index
    %c0_8 = arith.constant 0 : index
    %8 = vector.load %arg4[%c0_7, %c0_8] : memref<8x128xbf16, #tpu.memory_space<vmem>>, vector<8x128xbf16>
    tpu.vector_store %arg4[%c0_7, %c0_8], %7 {strides = array<i32>} : memref<8x128xbf16, #tpu.memory_space<vmem>>, vector<8x128xbf16>,
    return
  }
  func.func @transform_0(%arg0: i32) -> (i32, i32) {
    %c0_i32 = arith.constant 0 : i32
    %c0_i32_0 = arith.constant 0 : i32
    return %c0_i32, %arg0 : i32, i32
  }
  func.func @transform_1(%arg0: i32) -> (i32, i32) {
    %c0_i32 = arith.constant 0 : i32
    %c0_i32_0 = arith.constant 0 : i32
    %c0_i32_1 = arith.constant 0 : i32
    return %c0_i32, %c0_i32_0 : i32, i32
  }
  func.func @transform_2(%arg0: i32) -> (i32, i32) {
    %c0_i32 = arith.constant 0 : i32
    %c0_i32_0 = arith.constant 0 : i32
    %c0_i32_1 = arith.constant 0 : i32
    return %c0_i32, %c0_i32_0 : i32, i32
  }
  func.func @transform_3(%arg0: i32) -> (i32, i32) {
    %c0_i32 = arith.constant 0 : i32
    %c0_i32_0 = arith.constant 0 : i32
    return %c0_i32, %arg0 : i32, i32
  }
}

</mosaic_0001>

<llo_original>
// kernel: simple_nn_forward.1
$region0: #{simple_nn_forward.1}
  #allocation0 [shape = 'u32[]', space=smem, size = 0x4, offset = 0x4, fixed_abs, tag = 'smem constant byte address 0x4 - core index']
  #allocation1 [shape = 'u32[144,128]{1,0:T(1,128)}', space=vmem, size = 0x12000, scoped, tag = 'internal scratch']
  %s0 = inlined_call_operand.vmem [shape: f32[8,128], index: 0, kind: input, shape index: {}]
  %s1 = inlined_call_operand.vmem [shape: f32[8,8], index: 1, kind: input, shape index: {}]
  %s2 = inlined_call_operand.vmem [shape: f32[8,8], index: 2, kind: input, shape index: {}]
  %s3 = inlined_call_operand.vmem [shape: bf16[8,128], index: 3, kind: output, shape index: {}]
  %s4 = sld [smem:[#allocation0]]
  $region22: #{simple_nn_forward.1} parent=0
    _
  %s6 = ssub.s32 1, %s4
  %s7 = scalar_select 0, %s6, %s4
  // Predicated region
  $region2: #{simple_nn_forward.1} parent=0 // pred_check
    _
  $region3: #{simple_nn_forward.1} parent=0 // pred_check_branch
    %9 = sbr.rel (0) target = $region5
  $region4: #{simple_nn_forward.1} parent=0 // pred_region
    _
  $region5: #{simple_nn_forward.1} parent=0 // pred_fallthru
    _
  // Predicated region
  $region6: #{simple_nn_forward.1} parent=0 // pred_check
    _
  $region7: #{simple_nn_forward.1} parent=0 // pred_check_branch
    %11 = sbr.rel (0) target = $region9
  $region8: #{simple_nn_forward.1} parent=0 // pred_region
    _
  $region9: #{simple_nn_forward.1} parent=0 // pred_fallthru
    _
  // Predicated region
  $region10: #{simple_nn_forward.1} parent=0 // pred_check
    _
  $region11: #{simple_nn_forward.1} parent=0 // pred_check_branch
    %13 = sbr.rel (0) target = $region13
  $region12: #{simple_nn_forward.1} parent=0 // pred_region
    _
  $region13: #{simple_nn_forward.1} parent=0 // pred_fallthru
    _
  %v14 = vld [vmem:[%s0] sm:$0xff]
  %v15 = vld [vmem:[%s1] sm:$0xff]
  %vm16 = vcmask 64512
  %v18 = vsel %vm16, %v15, 0
  %20 = vmatprep.subr.mxu0 0.0
  %21 = vmatpush1.msra.mxu0 %v14
  %22 = vmatprep.subr.mxu0 0.0
  %23 = vmatpush1.msra.mxu0 0.0
  %24 = vmatprep.subr.mxu0 0.0
  %25 = vmatpush1.msra.mxu0 0.0
  %26 = vmatprep.subr.mxu0 0.0
  %27 = vmatpush1.msra.mxu0 0.0
  %28 = vmatprep.subr.mxu0 0.0
  %29 = vmatpush1.msra.mxu0 0.0
  %30 = vmatprep.subr.mxu0 0.0
  %31 = vmatpush1.msra.mxu0 0.0
  %32 = vmatprep.subr.mxu0 0.0
  %33 = vmatpush1.msra.mxu0 0.0
  %34 = vmatprep.subr.mxu0 0.0
  %35 = vmatpush1.msra.mxu0 0.0
  %36 = vmatprep.subr.mxu0 0.0
  %37 = vmatpush1.msra.mxu0 0.0
  %38 = vmatprep.subr.mxu0 0.0
  %39 = vmatpush1.msra.mxu0 0.0
  %40 = vmatprep.subr.mxu0 0.0
  %41 = vmatpush1.msra.mxu0 0.0
  %42 = vmatprep.subr.mxu0 0.0
  %43 = vmatpush1.msra.mxu0 0.0
  %44 = vmatprep.subr.mxu0 0.0
  %45 = vmatpush1.msra.mxu0 0.0
  %46 = vmatprep.subr.mxu0 0.0
  %47 = vmatpush1.msra.mxu0 0.0
  %48 = vmatprep.subr.mxu0 0.0
  %49 = vmatpush1.msra.mxu0 0.0
  %50 = vmatprep.subr.mxu0 0.0
  %51 = vmatpush1.msra.mxu0 0.0
  %52 = vmatprep.subr.mxu0 0.0
  %53 = vmatpush1.msra.mxu0 0.0
  %54 = vmatprep.subr.mxu0 0.0
  %55 = vmatpush1.msra.mxu0 0.0
  %56 = vmatprep.subr.mxu0 0.0
  %57 = vmatpush1.msra.mxu0 0.0
  %58 = vmatprep.subr.mxu0 0.0
  %59 = vmatpush1.msra.mxu0 0.0
  %60 = vmatprep.subr.mxu0 0.0
  %61 = vmatpush1.msra.mxu0 0.0
  %62 = vmatprep.subr.mxu0 0.0
  %63 = vmatpush1.msra.mxu0 0.0
  %64 = vmatprep.subr.mxu0 0.0
  %65 = vmatpush1.msra.mxu0 0.0
  %66 = vmatprep.subr.mxu0 0.0
  %67 = vmatpush1.msra.mxu0 0.0
  %68 = vmatprep.subr.mxu0 0.0
  %69 = vmatpush1.msra.mxu0 0.0
  %70 = vmatprep.subr.mxu0 0.0
  %71 = vmatpush1.msra.mxu0 0.0
  %72 = vmatprep.subr.mxu0 0.0
  %73 = vmatpush1.msra.mxu0 0.0
  %74 = vmatprep.subr.mxu0 0.0
  %75 = vmatpush1.msra.mxu0 0.0
  %76 = vmatprep.subr.mxu0 0.0
  %77 = vmatpush1.msra.mxu0 0.0
  %78 = vmatprep.subr.mxu0 0.0
  %79 = vmatpush1.msra.mxu0 0.0
  %80 = vmatprep.subr.mxu0 0.0
  %81 = vmatpush1.msra.mxu0 0.0
  %82 = vmatprep.subr.mxu0 0.0
  %83 = vmatpush1.msra.mxu0 0.0
  %84 = vmatprep.mubr.f32.mxu0 0.0
  %85 = vmatmul.mubr.f32.gmra.mrb[0].mxu0 %v18
  %v86 = vpop.f32.mrb[0].mxu0
  %v87 = vadd.f32 0.0, %v86
  %v88 = vpop.f32.mrb[0].mxu0
  %89 = vdwg.mxu0
  %v90 = vmax.f32 %v87, 0.0
  %v91 = vld [vmem:[%s2] sm:$0xff]
  %v93 = vsel %vm16, %v91, 0
  %95 = vmatprep.subr.mxu0 0.0
  %96 = vmatpush1.msra.mxu0 %v90
  %97 = vmatprep.subr.mxu0 0.0
  %98 = vmatpush1.msra.mxu0 0.0
  %99 = vmatprep.subr.mxu0 0.0
  %100 = vmatpush1.msra.mxu0 0.0
  %101 = vmatprep.subr.mxu0 0.0
  %102 = vmatpush1.msra.mxu0 0.0
  %103 = vmatprep.subr.mxu0 0.0
  %104 = vmatpush1.msra.mxu0 0.0
  %105 = vmatprep.subr.mxu0 0.0
  %106 = vmatpush1.msra.mxu0 0.0
  %107 = vmatprep.subr.mxu0 0.0
  %108 = vmatpush1.msra.mxu0 0.0
  %109 = vmatprep.subr.mxu0 0.0
  %110 = vmatpush1.msra.mxu0 0.0
  %111 = vmatprep.subr.mxu0 0.0
  %112 = vmatpush1.msra.mxu0 0.0
  %113 = vmatprep.subr.mxu0 0.0
  %114 = vmatpush1.msra.mxu0 0.0
  %115 = vmatprep.subr.mxu0 0.0
  %116 = vmatpush1.msra.mxu0 0.0
  %117 = vmatprep.subr.mxu0 0.0
  %118 = vmatpush1.msra.mxu0 0.0
  %119 = vmatprep.subr.mxu0 0.0
  %120 = vmatpush1.msra.mxu0 0.0
  %121 = vmatprep.subr.mxu0 0.0
  %122 = vmatpush1.msra.mxu0 0.0
  %123 = vmatprep.subr.mxu0 0.0
  %124 = vmatpush1.msra.mxu0 0.0
  %125 = vmatprep.subr.mxu0 0.0
  %126 = vmatpush1.msra.mxu0 0.0
  %127 = vmatprep.subr.mxu0 0.0
  %128 = vmatpush1.msra.mxu0 0.0
  %129 = vmatprep.subr.mxu0 0.0
  %130 = vmatpush1.msra.mxu0 0.0
  %131 = vmatprep.subr.mxu0 0.0
  %132 = vmatpush1.msra.mxu0 0.0
  %133 = vmatprep.subr.mxu0 0.0
  %134 = vmatpush1.msra.mxu0 0.0
  %135 = vmatprep.subr.mxu0 0.0
  %136 = vmatpush1.msra.mxu0 0.0
  %137 = vmatprep.subr.mxu0 0.0
  %138 = vmatpush1.msra.mxu0 0.0
  %139 = vmatprep.subr.mxu0 0.0
  %140 = vmatpush1.msra.mxu0 0.0
  %141 = vmatprep.subr.mxu0 0.0
  %142 = vmatpush1.msra.mxu0 0.0
  %143 = vmatprep.subr.mxu0 0.0
  %144 = vmatpush1.msra.mxu0 0.0
  %145 = vmatprep.subr.mxu0 0.0
  %146 = vmatpush1.msra.mxu0 0.0
  %147 = vmatprep.subr.mxu0 0.0
  %148 = vmatpush1.msra.mxu0 0.0
  %149 = vmatprep.subr.mxu0 0.0
  %150 = vmatpush1.msra.mxu0 0.0
  %151 = vmatprep.subr.mxu0 0.0
  %152 = vmatpush1.msra.mxu0 0.0
  %153 = vmatprep.subr.mxu0 0.0
  %154 = vmatpush1.msra.mxu0 0.0
  %155 = vmatprep.subr.mxu0 0.0
  %156 = vmatpush1.msra.mxu0 0.0
  %157 = vmatprep.subr.mxu0 0.0
  %158 = vmatpush1.msra.mxu0 0.0
  %159 = vmatprep.mubr.f32.mxu0 0.0
  %160 = vmatmul.mubr.f32.gmra.mrb[0].mxu0 %v93
  %v161 = vpop.f32.mrb[0].mxu0
  %v162 = vadd.f32 0.0, %v161
  %v163 = vpop.f32.mrb[0].mxu0
  %164 = vdwg.mxu0
  %v165 = vpack.c.bf16 %v162, %v162
  %166 = vst [vmem:[%s3] sm:$0xf] %v165
  // Predicated region
  $region14: #{simple_nn_forward.1} parent=0 // pred_check
    _
  $region15: #{simple_nn_forward.1} parent=0 // pred_check_branch
    %168 = sbr.rel (0) target = $region17
  $region16: #{simple_nn_forward.1} parent=0 // pred_region
    _
  $region17: #{simple_nn_forward.1} parent=0 // pred_fallthru
    _
  // Predicated region
  $region18: #{simple_nn_forward.1} parent=0 // pred_check
    _
  $region19: #{simple_nn_forward.1} parent=0 // pred_check_branch
    %170 = sbr.rel (0) target = $region21
  $region20: #{simple_nn_forward.1} parent=0 // pred_region
    _
  $region21: #{simple_nn_forward.1} parent=0 // pred_fallthru
    _

</llo_original>
